<compile_context>
chip_gen: v7x
topology: tpu7x:2x2x1
jax: 0.10.0
libtpu: 0.0.40
codegen_flags: <defaults>
</compile_context>

<pallas_src>
import jax
import jax.numpy as jnp
from jax import lax
from jax.experimental import pallas as pl
from jax.experimental.pallas import tpu as pltpu


def stmp_kernel(lens_ref, emb_ref, wa_ref, ba_ref, wb_ref, bb_ref, out_ref):
    # emb_ref : (L, E, TB) f32  -- batch in lanes (lane-dense even for E << 128)
    # lens_ref: (1, TB)    i32
    # wa/wb   : (E, E)     f32  -- original nn.Linear weights (hs^T = Wa @ ms^T)
    # ba/bb   : (E, 1)     f32
    # out_ref : (E, TB)    f32
    L, E, TB = emb_ref.shape

    lens_i = lens_ref[...]                      # (1, TB) int32
    last = lens_i - 1                           # (1, TB) index of last item

    zeros = jnp.zeros((E, TB), dtype=jnp.float32)

    def body(l, carry):
        acc_sum, acc_last = carry
        slab = emb_ref[l]                       # (E, TB): one sequence position
        acc_sum = acc_sum + slab                # running sum over L (VPU)
        # vectorized one-hot select of the last item per batch lane
        acc_last = jnp.where(last == l, slab, acc_last)
        return acc_sum, acc_last

    # Single sweep over L; unrolled (L is a small session length) so the LLO
    # scheduler sees the whole stream.
    acc_sum, acc_last = lax.fori_loop(0, L, body, (zeros, zeros), unroll=True)

    lens_f = lens_i.astype(jnp.float32)         # (1, TB)
    ms = acc_sum / lens_f                       # (E, TB) mean memory
    mt = acc_last                               # (E, TB) last item

    hs = jnp.tanh(jnp.dot(wa_ref[...], ms, preferred_element_type=jnp.float32)
                  + ba_ref[...])
    ht = jnp.tanh(jnp.dot(wb_ref[...], mt, preferred_element_type=jnp.float32)
                  + bb_ref[...])

    out_ref[...] = hs * ht                      # lane-dense (TB lanes) store


def stmp_forward(item_seq, item_seq_len, item_emb_table, wa, ba, wb, bb, *,
                 tb=512):
    """item_seq: (B, L) int32, item_seq_len: (B,) int32. Returns (B, E) f32."""
    B, L = item_seq.shape
    E = item_emb_table.shape[1]

    # --- XLA glue: embedding gather into batch-in-lanes (L, E, B) layout ----
    emb = jnp.take(item_emb_table, item_seq, axis=0).astype(jnp.float32)  # (B,L,E)
    emb = jnp.transpose(emb, (1, 2, 0))                                   # (L,E,B)
    lens_i = item_seq_len.astype(jnp.int32)                               # (B,)

    # --- batch-tile sizing: batch lives in lanes -> tb multiple of 128 ------
    Ep = ((E + 7) // 8) * 8                         # sublane-padded E in a tile
    VMEM_TILE_BUDGET = 40 * 1024 * 1024             # v7x-safe (64 MiB physical)
    # double-buffered bytes per batch lane: emb + lens + out blocks
    bytes_per_lane = 4 * 2 * (L * Ep + 8 + Ep)
    tb_cap = max(128, (VMEM_TILE_BUDGET // bytes_per_lane) // 128 * 128)
    tb = max(128, (int(tb) // 128) * 128)
    tb = min(tb, tb_cap, ((B + 127) // 128) * 128)

    Bp = ((B + tb - 1) // tb) * tb
    if Bp != B:
        pad = Bp - B
        emb = jnp.pad(emb, ((0, 0), (0, 0), (0, pad)))
        lens_i = jnp.concatenate([lens_i, jnp.ones((pad,), jnp.int32)])
    lens2d = lens_i.reshape(1, Bp)

    wa_f = wa.astype(jnp.float32)                   # (E, E), untransposed
    wb_f = wb.astype(jnp.float32)
    ba_c = ba.astype(jnp.float32).reshape(E, 1)
    bb_c = bb.astype(jnp.float32).reshape(E, 1)

    grid = (Bp // tb,)

    # --- honest VMEM accounting (2x double buffer per pipelined array) ------
    def _tile_bytes(rows, cols, itemsize=4):
        return ((rows + 7) // 8) * 8 * (((cols + 127) // 128) * 128) * itemsize

    need = 2 * (L * _tile_bytes(E, tb)              # emb block
                + _tile_bytes(1, tb)                # lens block
                + _tile_bytes(E, tb)                # out block
                + 2 * _tile_bytes(E, E)             # Wa, Wb
                + 2 * _tile_bytes(E, 1))            # ba, bb
    vmem_limit = int(min(max(need + 2 * 1024 * 1024, 16 * 1024 * 1024),
                         48 * 1024 * 1024))

    out = pl.pallas_call(
        stmp_kernel,
        out_shape=jax.ShapeDtypeStruct((E, Bp), jnp.float32),
        grid_spec=pltpu.PrefetchScalarGridSpec(
            num_scalar_prefetch=0,
            grid=grid,
            in_specs=[
                pl.BlockSpec((1, tb), lambda b: (0, b)),        # lens (1, Bp)
                pl.BlockSpec((L, E, tb), lambda b: (0, 0, b)),  # emb (L, E, Bp)
                pl.BlockSpec((E, E), lambda b: (0, 0)),         # Wa
                pl.BlockSpec((E, 1), lambda b: (0, 0)),         # ba
                pl.BlockSpec((E, E), lambda b: (0, 0)),         # Wb
                pl.BlockSpec((E, 1), lambda b: (0, 0)),         # bb
            ],
            out_specs=pl.BlockSpec((E, tb), lambda b: (0, b)),
        ),
        compiler_params=pltpu.CompilerParams(
            dimension_semantics=("parallel",),
            vmem_limit_bytes=vmem_limit,
        ),
    )(lens2d, emb, wa_f, ba_c, wb_f, bb_c)

    return out[:, :B].T                             # (B, E)


def _reference(item_seq, item_seq_len, item_emb_table, wa, ba, wb, bb):
    emb = jnp.take(item_emb_table, item_seq, axis=0)             # (B, L, E)
    lens = item_seq_len.astype(jnp.float32)[:, None]
    ms = jnp.sum(emb, axis=1) / lens
    idx = (item_seq_len - 1).astype(jnp.int32)
    mt = emb[jnp.arange(emb.shape[0]), idx, :]
    hs = jnp.tanh(ms @ wa.T + ba)
    ht = jnp.tanh(mt @ wb.T + bb)
    return hs * ht


if __name__ == "__main__":
    key = jax.random.PRNGKey(0)
    # embedding_size = 8 (from the module); B chosen so a small tb exercises a
    # multi-step grid plus batch padding. Production default is tb=512.
    B, L, E = 300, 8, 8
    n_items = 32

    k_emb, k_wa, k_ba, k_wb, k_bb, k_seq, k_len = jax.random.split(key, 7)

    item_emb_table = jax.random.normal(k_emb, (n_items, E), dtype=jnp.float32) * 0.1
    item_emb_table = item_emb_table.at[0].set(0.0)               # padding_idx=0
    wa = jax.random.normal(k_wa, (E, E), dtype=jnp.float32) * 0.1
    ba = jax.random.normal(k_ba, (E,), dtype=jnp.float32) * 0.1
    wb = jax.random.normal(k_wb, (E, E), dtype=jnp.float32) * 0.1
    bb = jax.random.normal(k_bb, (E,), dtype=jnp.float32) * 0.1

    item_seq = jax.random.randint(k_seq, (B, L), minval=1, maxval=n_items,
                                  dtype=jnp.int32)
    item_seq_len = jax.random.randint(k_len, (B,), minval=1, maxval=L + 1,
                                      dtype=jnp.int32)
    pad_mask = jnp.arange(L)[None, :] < item_seq_len[:, None]
    item_seq = jnp.where(pad_mask, item_seq, 0)   # zero padding positions

    # tb=128 here only to exercise a 3-step grid at toy batch size.
    out = stmp_forward(item_seq, item_seq_len, item_emb_table, wa, ba, wb, bb,
                       tb=128)
    out = jax.block_until_ready(out)

    ref = _reference(item_seq, item_seq_len, item_emb_table, wa, ba, wb, bb)
    assert out.shape == (B, E)
    max_err = float(jnp.max(jnp.abs(out - ref)))
    assert jnp.allclose(out, ref, atol=1e-5, rtol=1e-5), f"max_err={max_err}"

    print("KERNEL_OK")
</pallas_src>

<mosaic_0001>
module attributes {stable_mosaic.version = 11 : i64} {
  func.func @stmp_kernel(%arg0: i32, %arg1: memref<1x128xi32, #tpu.memory_space<vmem>>, %arg2: memref<8x8x128xf32, #tpu.memory_space<vmem>>, %arg3: memref<8x8xf32, #tpu.memory_space<vmem>>, %arg4: memref<8x1xf32, #tpu.memory_space<vmem>>, %arg5: memref<8x8xf32, #tpu.memory_space<vmem>>, %arg6: memref<8x1xf32, #tpu.memory_space<vmem>>, %arg7: memref<8x128xf32, #tpu.memory_space<vmem>>) attributes {dimension_semantics = [#tpu.dimension_semantics<parallel>], iteration_bounds = array<i64: 3>, scalar_prefetch = 0 : i64, scratch_operands = 0 : i64, tpu.core_type = #tpu.core_type<tc>, window_params = [{transform_indices = @transform_0, window_bounds = array<i64: 1, 128>}, {transform_indices = @transform_1, window_bounds = array<i64: 8, 8, 128>}, {pipeline_mode = #tpu.pipeline_mode<synchronous>, transform_indices = @transform_2, window_bounds = array<i64: 8, 8>}, {pipeline_mode = #tpu.pipeline_mode<synchronous>, transform_indices = @transform_3, window_bounds = array<i64: 8, 1>}, {pipeline_mode = #tpu.pipeline_mode<synchronous>, transform_indices = @transform_4, window_bounds = array<i64: 8, 8>}, {pipeline_mode = #tpu.pipeline_mode<synchronous>, transform_indices = @transform_5, window_bounds = array<i64: 8, 1>}, {transform_indices = @transform_6, window_bounds = array<i64: 8, 128>}]} {
    %c0 = arith.constant 0 : index
    %c0_0 = arith.constant 0 : index
    %0 = vector.load %arg1[%c0, %c0_0] : memref<1x128xi32, #tpu.memory_space<vmem>>, vector<1x128xi32>
    %c1_i32 = arith.constant 1 : i32
    %1 = vector.broadcast %c1_i32 : i32 to vector<1x128xi32>
    %2 = arith.subi %0, %1 : vector<1x128xi32>
    %cst = arith.constant 0.000000e+00 : f32
    %3 = vector.broadcast %cst : f32 to vector<8x128xf32>
    %c0_i32 = arith.constant 0 : i32
    %4 = arith.index_cast %c0_i32 : i32 to index
    %c0_1 = arith.constant 0 : index
    %c0_2 = arith.constant 0 : index
    %5 = vector.load %arg2[%4, %c0_1, %c0_2] : memref<8x8x128xf32, #tpu.memory_space<vmem>>, vector<1x8x128xf32>
    %6 = vector.shape_cast %5 : vector<1x8x128xf32> to vector<8x128xf32>
    %7 = arith.addf %3, %6 : vector<8x128xf32>
    %8 = vector.broadcast %c0_i32 : i32 to vector<1x128xi32>
    %9 = arith.cmpi eq, %2, %8 : vector<1x128xi32>
    %10 = vector.shape_cast %9 : vector<1x128xi1> to vector<1x128xi1>
    %11 = vector.broadcast %10 : vector<1x128xi1> to vector<8x128xi1>
    %12 = arith.select %11, %6, %3 : vector<8x128xi1>, vector<8x128xf32>
    %c1_i32_3 = arith.constant 1 : i32
    %13 = arith.index_cast %c1_i32_3 : i32 to index
    %c0_4 = arith.constant 0 : index
    %c0_5 = arith.constant 0 : index
    %14 = vector.load %arg2[%13, %c0_4, %c0_5] : memref<8x8x128xf32, #tpu.memory_space<vmem>>, vector<1x8x128xf32>
    %15 = vector.shape_cast %14 : vector<1x8x128xf32> to vector<8x128xf32>
    %16 = arith.addf %7, %15 : vector<8x128xf32>
    %17 = vector.broadcast %c1_i32_3 : i32 to vector<1x128xi32>
    %18 = arith.cmpi eq, %2, %17 : vector<1x128xi32>
    %19 = vector.shape_cast %18 : vector<1x128xi1> to vector<1x128xi1>
    %20 = vector.broadcast %19 : vector<1x128xi1> to vector<8x128xi1>
    %21 = arith.select %20, %15, %12 : vector<8x128xi1>, vector<8x128xf32>
    %c2_i32 = arith.constant 2 : i32
    %22 = arith.index_cast %c2_i32 : i32 to index
    %c0_6 = arith.constant 0 : index
    %c0_7 = arith.constant 0 : index
    %23 = vector.load %arg2[%22, %c0_6, %c0_7] : memref<8x8x128xf32, #tpu.memory_space<vmem>>, vector<1x8x128xf32>
    %24 = vector.shape_cast %23 : vector<1x8x128xf32> to vector<8x128xf32>
    %25 = arith.addf %16, %24 : vector<8x128xf32>
    %26 = vector.broadcast %c2_i32 : i32 to vector<1x128xi32>
    %27 = arith.cmpi eq, %2, %26 : vector<1x128xi32>
    %28 = vector.shape_cast %27 : vector<1x128xi1> to vector<1x128xi1>
    %29 = vector.broadcast %28 : vector<1x128xi1> to vector<8x128xi1>
    %30 = arith.select %29, %24, %21 : vector<8x128xi1>, vector<8x128xf32>
    %c3_i32 = arith.constant 3 : i32
    %31 = arith.index_cast %c3_i32 : i32 to index
    %c0_8 = arith.constant 0 : index
    %c0_9 = arith.constant 0 : index
    %32 = vector.load %arg2[%31, %c0_8, %c0_9] : memref<8x8x128xf32, #tpu.memory_space<vmem>>, vector<1x8x128xf32>
    %33 = vector.shape_cast %32 : vector<1x8x128xf32> to vector<8x128xf32>
    %34 = arith.addf %25, %33 : vector<8x128xf32>
    %35 = vector.broadcast %c3_i32 : i32 to vector<1x128xi32>
    %36 = arith.cmpi eq, %2, %35 : vector<1x128xi32>
    %37 = vector.shape_cast %36 : vector<1x128xi1> to vector<1x128xi1>
    %38 = vector.broadcast %37 : vector<1x128xi1> to vector<8x128xi1>
    %39 = arith.select %38, %33, %30 : vector<8x128xi1>, vector<8x128xf32>
    %c4_i32 = arith.constant 4 : i32
    %40 = arith.index_cast %c4_i32 : i32 to index
    %c0_10 = arith.constant 0 : index
    %c0_11 = arith.constant 0 : index
    %41 = vector.load %arg2[%40, %c0_10, %c0_11] : memref<8x8x128xf32, #tpu.memory_space<vmem>>, vector<1x8x128xf32>
    %42 = vector.shape_cast %41 : vector<1x8x128xf32> to vector<8x128xf32>
    %43 = arith.addf %34, %42 : vector<8x128xf32>
    %44 = vector.broadcast %c4_i32 : i32 to vector<1x128xi32>
    %45 = arith.cmpi eq, %2, %44 : vector<1x128xi32>
    %46 = vector.shape_cast %45 : vector<1x128xi1> to vector<1x128xi1>
    %47 = vector.broadcast %46 : vector<1x128xi1> to vector<8x128xi1>
    %48 = arith.select %47, %42, %39 : vector<8x128xi1>, vector<8x128xf32>
    %c5_i32 = arith.constant 5 : i32
    %49 = arith.index_cast %c5_i32 : i32 to index
    %c0_12 = arith.constant 0 : index
    %c0_13 = arith.constant 0 : index
    %50 = vector.load %arg2[%49, %c0_12, %c0_13] : memref<8x8x128xf32, #tpu.memory_space<vmem>>, vector<1x8x128xf32>
    %51 = vector.shape_cast %50 : vector<1x8x128xf32> to vector<8x128xf32>
    %52 = arith.addf %43, %51 : vector<8x128xf32>
    %53 = vector.broadcast %c5_i32 : i32 to vector<1x128xi32>
    %54 = arith.cmpi eq, %2, %53 : vector<1x128xi32>
    %55 = vector.shape_cast %54 : vector<1x128xi1> to vector<1x128xi1>
    %56 = vector.broadcast %55 : vector<1x128xi1> to vector<8x128xi1>
    %57 = arith.select %56, %51, %48 : vector<8x128xi1>, vector<8x128xf32>
    %c6_i32 = arith.constant 6 : i32
    %58 = arith.index_cast %c6_i32 : i32 to index
    %c0_14 = arith.constant 0 : index
    %c0_15 = arith.constant 0 : index
    %59 = vector.load %arg2[%58, %c0_14, %c0_15] : memref<8x8x128xf32, #tpu.memory_space<vmem>>, vector<1x8x128xf32>
    %60 = vector.shape_cast %59 : vector<1x8x128xf32> to vector<8x128xf32>
    %61 = arith.addf %52, %60 : vector<8x128xf32>
    %62 = vector.broadcast %c6_i32 : i32 to vector<1x128xi32>
    %63 = arith.cmpi eq, %2, %62 : vector<1x128xi32>
    %64 = vector.shape_cast %63 : vector<1x128xi1> to vector<1x128xi1>
    %65 = vector.broadcast %64 : vector<1x128xi1> to vector<8x128xi1>
    %66 = arith.select %65, %60, %57 : vector<8x128xi1>, vector<8x128xf32>
    %c7_i32 = arith.constant 7 : i32
    %67 = arith.index_cast %c7_i32 : i32 to index
    %c0_16 = arith.constant 0 : index
    %c0_17 = arith.constant 0 : index
    %68 = vector.load %arg2[%67, %c0_16, %c0_17] : memref<8x8x128xf32, #tpu.memory_space<vmem>>, vector<1x8x128xf32>
    %69 = vector.shape_cast %68 : vector<1x8x128xf32> to vector<8x128xf32>
    %70 = arith.addf %61, %69 : vector<8x128xf32>
    %71 = vector.broadcast %c7_i32 : i32 to vector<1x128xi32>
    %72 = arith.cmpi eq, %2, %71 : vector<1x128xi32>
    %73 = vector.shape_cast %72 : vector<1x128xi1> to vector<1x128xi1>
    %74 = vector.broadcast %73 : vector<1x128xi1> to vector<8x128xi1>
    %75 = arith.select %74, %69, %66 : vector<8x128xi1>, vector<8x128xf32>
    %c8_i32 = arith.constant 8 : i32
    %76 = arith.sitofp %0 : vector<1x128xi32> to vector<1x128xf32>
    %77 = vector.broadcast %76 : vector<1x128xf32> to vector<8x128xf32>
    %78 = arith.divf %70, %77 : vector<8x128xf32>
    %c0_18 = arith.constant 0 : index
    %c0_19 = arith.constant 0 : index
    %79 = vector.load %arg3[%c0_18, %c0_19] : memref<8x8xf32, #tpu.memory_space<vmem>>, vector<8x8xf32>
    %cst_20 = arith.constant dense<0.000000e+00> : vector<8x128xf32>
    %80 = tpu.matmul %79, %78, %cst_20 {dimension_numbers = #tpu.dot_dimension_numbers<[1], [0], [0], [1], [0, 0, 1, 1], [], []>} : vector<8x8xf32>, vector<8x128xf32>, vector<8x128xf32> -> vector<8x128xf32>
    %c0_21 = arith.constant 0 : index
    %c0_22 = arith.constant 0 : index
    %81 = vector.load %arg4[%c0_21, %c0_22] : memref<8x1xf32, #tpu.memory_space<vmem>>, vector<8x1xf32>
    %82 = vector.broadcast %81 : vector<8x1xf32> to vector<8x128xf32>
    %83 = arith.addf %80, %82 : vector<8x128xf32>
    %84 = math.tanh %83 : vector<8x128xf32>
    %c0_23 = arith.constant 0 : index
    %c0_24 = arith.constant 0 : index
    %85 = vector.load %arg5[%c0_23, %c0_24] : memref<8x8xf32, #tpu.memory_space<vmem>>, vector<8x8xf32>
    %cst_25 = arith.constant dense<0.000000e+00> : vector<8x128xf32>
    %86 = tpu.matmul %85, %75, %cst_25 {dimension_numbers = #tpu.dot_dimension_numbers<[1], [0], [0], [1], [0, 0, 1, 1], [], []>} : vector<8x8xf32>, vector<8x128xf32>, vector<8x128xf32> -> vector<8x128xf32>
    %c0_26 = arith.constant 0 : index
    %c0_27 = arith.constant 0 : index
    %87 = vector.load %arg6[%c0_26, %c0_27] : memref<8x1xf32, #tpu.memory_space<vmem>>, vector<8x1xf32>
    %88 = vector.broadcast %87 : vector<8x1xf32> to vector<8x128xf32>
    %89 = arith.addf %86, %88 : vector<8x128xf32>
    %90 = math.tanh %89 : vector<8x128xf32>
    %91 = arith.mulf %84, %90 : vector<8x128xf32>
    %c0_28 = arith.constant 0 : index
    %c0_29 = arith.constant 0 : index
    %92 = vector.load %arg7[%c0_28, %c0_29] : memref<8x128xf32, #tpu.memory_space<vmem>>, vector<8x128xf32>
    tpu.vector_store %arg7[%c0_28, %c0_29], %91 {strides = array<i32>} : memref<8x128xf32, #tpu.memory_space<vmem>>, vector<8x128xf32>,
    return
  }
  func.func @transform_0(%arg0: i32) -> (i32, i32) {
    %c0_i32 = arith.constant 0 : i32
    %c0_i32_0 = arith.constant 0 : i32
    return %c0_i32, %arg0 : i32, i32
  }
  func.func @transform_1(%arg0: i32) -> (i32, i32, i32) {
    %c0_i32 = arith.constant 0 : i32
    %c0_i32_0 = arith.constant 0 : i32
    %c0_i32_1 = arith.constant 0 : i32
    return %c0_i32, %c0_i32_0, %arg0 : i32, i32, i32
  }
  func.func @transform_2(%arg0: i32) -> (i32, i32) {
    %c0_i32 = arith.constant 0 : i32
    %c0_i32_0 = arith.constant 0 : i32
    %c0_i32_1 = arith.constant 0 : i32
    return %c0_i32, %c0_i32_0 : i32, i32
  }
  func.func @transform_3(%arg0: i32) -> (i32, i32) {
    %c0_i32 = arith.constant 0 : i32
    %c0_i32_0 = arith.constant 0 : i32
    %c0_i32_1 = arith.constant 0 : i32
    return %c0_i32, %c0_i32_0 : i32, i32
  }
  func.func @transform_4(%arg0: i32) -> (i32, i32) {
    %c0_i32 = arith.constant 0 : i32
    %c0_i32_0 = arith.constant 0 : i32
    %c0_i32_1 = arith.constant 0 : i32
    return %c0_i32, %c0_i32_0 : i32, i32
  }
  func.func @transform_5(%arg0: i32) -> (i32, i32) {
    %c0_i32 = arith.constant 0 : i32
    %c0_i32_0 = arith.constant 0 : i32
    %c0_i32_1 = arith.constant 0 : i32
    return %c0_i32, %c0_i32_0 : i32, i32
  }
  func.func @transform_6(%arg0: i32) -> (i32, i32) {
    %c0_i32 = arith.constant 0 : i32
    %c0_i32_0 = arith.constant 0 : i32
    return %c0_i32, %arg0 : i32, i32
  }
}

</mosaic_0001>

<llo_original>
// kernel: tpu_custom_call.1
$region0: #{tpu_custom_call.1}
  #allocation0 [shape = 'u32[]', space=smem, size = 0x4, offset = 0x4, fixed_abs, tag = 'smem constant byte address 0x4 - core index']
  #allocation1 [shape = 'u32[144,128]{1,0:T(1,128)}', space=vmem, size = 0x12000, scoped, tag = 'internal scratch']
  %s0 = inlined_call_operand.hbm [shape: s32[1,384], index: 0, kind: input, shape index: {}]
  %s1 = inlined_call_operand.hbm [shape: f32[8,8,384], index: 1, kind: input, shape index: {}]
  %s2 = inlined_call_operand.vmem [shape: f32[8,8], index: 2, kind: input, shape index: {}]
  %s3 = inlined_call_operand.vmem [shape: f32[8,1], index: 3, kind: input, shape index: {}]
  %s4 = inlined_call_operand.vmem [shape: f32[8,8], index: 4, kind: input, shape index: {}]
  %s5 = inlined_call_operand.vmem [shape: f32[8,1], index: 5, kind: input, shape index: {}]
  %s6 = inlined_call_operand.hbm [shape: f32[8,384], index: 6, kind: output, shape index: {}]
  %s7 = sld [smem:[#allocation0]]
  $region65: #{tpu_custom_call.1} parent=0
    _
  %s9 = ssub.s32 1, %s7
  %s10 = scalar_select 0, %s9, %s7
  $region1: #{tpu_custom_call.1} parent=0
    #allocation2 [shape = 'u8[1024]{0}', space=vmem, size = 0x400, scoped, tag = 'input window, operand 0']
    #allocation3 [shape = 's32[2]{0}', space=sflag, size = 0x8, scoped, tag = 'scoped memory for tpu_custom_call.1']
    #allocation4 [shape = 's32[2]{0}', space=sflag, size = 0x8, scoped, tag = 'scoped memory for tpu_custom_call.1']
    #allocation5 [shape = 'u8[65536]{0}', space=vmem, size = 0x10000, scoped, tag = 'input window, operand 1']
    #allocation6 [shape = 's32[2]{0}', space=sflag, size = 0x8, scoped, tag = 'scoped memory for tpu_custom_call.1']
    #allocation7 [shape = 'u8[8192]{0}', space=vmem, size = 0x2000, scoped, tag = 'output window, operand 0']
    %11 = vsyncpa [#allocation3], 0
    %s12 = scalar_lea.sflag [#allocation3], 1
    %13 = vsyncpa %s12, 0
    %14 = vsyncpa [#allocation6], 0
    %s15 = scalar_lea.sflag [#allocation6], 1
    %16 = vsyncpa %s15, 0
    %17 = vsyncpa [#allocation4], 0
    %s18 = scalar_lea.sflag [#allocation4], 1
    %19 = vsyncpa %s18, 0
    loop: start=0, step=1, limit=5
    $region2: #{tpu_custom_call.1} parent=1 // loop_pre_header
      _
    $region3: #{tpu_custom_call.1} parent=1 // loop_header
      %s21 = sphi 0, %s25
      %p22 = scmp.ge.s32.totalorder %s21, 5
      %s31 = sphi 0, %s33
      %s34 = sphi 0, %s31
      %s35 = sphi 0, %s34
      %s51 = sphi 0, %s35
      %s57 = sphi 0, %s59
      %s60 = sphi 0, %s57
      %s61 = sphi 0, %s60
      %s77 = sphi 0, %s61
      %s81 = sphi 0, %s81
      %s83 = sphi 0, %s81
      %s84 = sphi 0, %s83
      %s98 = sphi 0, %s84
      %s102 = sphi 0, %s102
      %s104 = sphi 0, %s102
      %s105 = sphi 0, %s104
      %s119 = sphi 0, %s105
      %s123 = sphi 0, %s123
      %s125 = sphi 0, %s123
      %s126 = sphi 0, %s125
      %s140 = sphi 0, %s126
      %s144 = sphi 0, %s144
      %s146 = sphi 0, %s144
      %s147 = sphi 0, %s146
      %s161 = sphi 0, %s147
      %s167 = sphi 0, %s169
      %s170 = sphi 0, %s167
      %s171 = sphi 0, %s170
      %s187 = sphi 0, %s171
    $region4: #{tpu_custom_call.1} parent=1 // loop_header_branch
      %24 = sbr.rel (%p22) target = $region8
    $region5: #{tpu_custom_call.1} parent=1 // loop_body
      %s26 = ssub.s32 %s21, 1
      %s27 = ssub.s32 %s21, 2
      %s28 = sadd.s32 %s21, 1
      %s29 = ssub.s32 %s21, %s28
      %p30 = scmp.eq.s32.totalorder %s29, 0
      %s32 = sadd.s32 %s31, 1
      %s33 = scalar_select %p30, %s31, %s32
      %p36 = pneg %p30
      %p37 = scmp.eq.s32.totalorder %s21, 2
      %p38 = por %p36, %p37
      %p39 = scmp.ne.s32.totalorder %s31, %s34
      %p40 = scmp.eq.s32.totalorder %s21, 0
      %p41 = por %p39, %p40
      %p42 = scmp.ne.s32.totalorder %s31, %s34
      %p43 = scmp.eq.s32.totalorder %s26, 2
      %p44 = por %p42, %p43
      %p45 = scmp.ne.s32.totalorder %s34, %s35
      %p46 = scmp.eq.s32.totalorder %s26, 0
      %p47 = por %p45, %p46
      %p48 = scmp.ne.s32.totalorder %s34, %s35
      %p49 = scmp.eq.s32.totalorder %s27, 2
      %p50 = por %p48, %p49
      %p52 = scmp.ne.s32.totalorder %s35, %s51
      %p53 = scmp.eq.s32.totalorder %s27, 0
      %p54 = por %p52, %p53
      %s55 = ssub.s32 %s21, %s28
      %p56 = scmp.eq.s32.totalorder %s55, 0
      %s58 = sadd.s32 %s57, 1
      %s59 = scalar_select %p56, %s57, %s58
      %p62 = pneg %p56
      %p63 = scmp.eq.s32.totalorder %s21, 2
      %p64 = por %p62, %p63
      %p65 = scmp.ne.s32.totalorder %s57, %s60
      %p66 = scmp.eq.s32.totalorder %s21, 0
      %p67 = por %p65, %p66
      %p68 = scmp.ne.s32.totalorder %s57, %s60
      %p69 = scmp.eq.s32.totalorder %s26, 2
      %p70 = por %p68, %p69
      %p71 = scmp.ne.s32.totalorder %s60, %s61
      %p72 = scmp.eq.s32.totalorder %s26, 0
      %p73 = por %p71, %p72
      %p74 = scmp.ne.s32.totalorder %s60, %s61
      %p75 = scmp.eq.s32.totalorder %s27, 2
      %p76 = por %p74, %p75
      %p78 = scmp.ne.s32.totalorder %s61, %s77
      %p79 = scmp.eq.s32.totalorder %s27, 0
      %p80 = por %p78, %p79
      %s82 = sadd.s32 %s81, 1
      %p85 = scmp.eq.s32.totalorder %s21, 2
      %p86 = scmp.ne.s32.totalorder %s81, %s83
      %p87 = scmp.eq.s32.totalorder %s21, 0
      %p88 = por %p86, %p87
      %p89 = scmp.ne.s32.totalorder %s81, %s83
      %p90 = scmp.eq.s32.totalorder %s26, 2
      %p91 = por %p89, %p90
      %p92 = scmp.ne.s32.totalorder %s83, %s84
      %p93 = scmp.eq.s32.totalorder %s26, 0
      %p94 = por %p92, %p93
      %p95 = scmp.ne.s32.totalorder %s83, %s84
      %p96 = scmp.eq.s32.totalorder %s27, 2
      %p97 = por %p95, %p96
      %p99 = scmp.ne.s32.totalorder %s84, %s98
      %p100 = scmp.eq.s32.totalorder %s27, 0
      %p101 = por %p99, %p100
      %s103 = sadd.s32 %s102, 1
      %p106 = scmp.eq.s32.totalorder %s21, 2
      %p107 = scmp.ne.s32.totalorder %s102, %s104
      %p108 = scmp.eq.s32.totalorder %s21, 0
      %p109 = por %p107, %p108
      %p110 = scmp.ne.s32.totalorder %s102, %s104
      %p111 = scmp.eq.s32.totalorder %s26, 2
      %p112 = por %p110, %p111
      %p113 = scmp.ne.s32.totalorder %s104, %s105
      %p114 = scmp.eq.s32.totalorder %s26, 0
      %p115 = por %p113, %p114
      %p116 = scmp.ne.s32.totalorder %s104, %s105
      %p117 = scmp.eq.s32.totalorder %s27, 2
      %p118 = por %p116, %p117
      %p120 = scmp.ne.s32.totalorder %s105, %s119
      %p121 = scmp.eq.s32.totalorder %s27, 0
      %p122 = por %p120, %p121
      %s124 = sadd.s32 %s123, 1
      %p127 = scmp.eq.s32.totalorder %s21, 2
      %p128 = scmp.ne.s32.totalorder %s123, %s125
      %p129 = scmp.eq.s32.totalorder %s21, 0
      %p130 = por %p128, %p129
      %p131 = scmp.ne.s32.totalorder %s123, %s125
      %p132 = scmp.eq.s32.totalorder %s26, 2
      %p133 = por %p131, %p132
      %p134 = scmp.ne.s32.totalorder %s125, %s126
      %p135 = scmp.eq.s32.totalorder %s26, 0
      %p136 = por %p134, %p135
      %p137 = scmp.ne.s32.totalorder %s125, %s126
      %p138 = scmp.eq.s32.totalorder %s27, 2
      %p139 = por %p137, %p138
      %p141 = scmp.ne.s32.totalorder %s126, %s140
      %p142 = scmp.eq.s32.totalorder %s27, 0
      %p143 = por %p141, %p142
      %s145 = sadd.s32 %s144, 1
      %p148 = scmp.eq.s32.totalorder %s21, 2
      %p149 = scmp.ne.s32.totalorder %s144, %s146
      %p150 = scmp.eq.s32.totalorder %s21, 0
      %p151 = por %p149, %p150
      %p152 = scmp.ne.s32.totalorder %s144, %s146
      %p153 = scmp.eq.s32.totalorder %s26, 2
      %p154 = por %p152, %p153
      %p155 = scmp.ne.s32.totalorder %s146, %s147
      %p156 = scmp.eq.s32.totalorder %s26, 0
      %p157 = por %p155, %p156
      %p158 = scmp.ne.s32.totalorder %s146, %s147
      %p159 = scmp.eq.s32.totalorder %s27, 2
      %p160 = por %p158, %p159
      %p162 = scmp.ne.s32.totalorder %s147, %s161
      %p163 = scmp.eq.s32.totalorder %s27, 0
      %p164 = por %p162, %p163
      %s165 = ssub.s32 %s21, %s28
      %p166 = scmp.eq.s32.totalorder %s165, 0
      %s168 = sadd.s32 %s167, 1
      %s169 = scalar_select %p166, %s167, %s168
      %p172 = pneg %p166
      %p173 = scmp.eq.s32.totalorder %s21, 2
      %p174 = por %p172, %p173
      %p175 = scmp.ne.s32.totalorder %s167, %s170
      %p176 = scmp.eq.s32.totalorder %s21, 0
      %p177 = por %p175, %p176
      %p178 = scmp.ne.s32.totalorder %s167, %s170
      %p179 = scmp.eq.s32.totalorder %s26, 2
      %p180 = por %p178, %p179
      %p181 = scmp.ne.s32.totalorder %s170, %s171
      %p182 = scmp.eq.s32.totalorder %s26, 0
      %p183 = por %p181, %p182
      %p184 = scmp.ne.s32.totalorder %s170, %s171
      %p185 = scmp.eq.s32.totalorder %s27, 2
      %p186 = por %p184, %p185
      %p188 = scmp.ne.s32.totalorder %s171, %s187
      %p189 = scmp.eq.s32.totalorder %s27, 0
      %p190 = por %p188, %p189
      %p191 = scmp.le.s32.totalorder 1, %s21
      %p192 = scmp.lt.s32.totalorder %s21, 4
      %p193 = pnand %p191, %p192
      %p194 = pneg %p193
      // Predicated region
      $region9: #{tpu_custom_call.1} parent=5 // pred_check
        _
      $region10: #{tpu_custom_call.1} parent=5 // pred_check_branch
        %196 = sbr.rel (%p193) target = $region12
      $region11: #{tpu_custom_call.1} parent=5 // pred_region
        %s197 = ssub.s32 %s21, 1
        // Predicated region
        $region13: #{tpu_custom_call.1} parent=11 // pred_check
          %p198 = pneg %p94
        $region14: #{tpu_custom_call.1} parent=11 // pred_check_branch
          %200 = sbr.rel (%p198) target = $region16
        $region15: #{tpu_custom_call.1} parent=11 // pred_region
          _
        $region16: #{tpu_custom_call.1} parent=11 // pred_fallthru
          _
        // Predicated region
        $region17: #{tpu_custom_call.1} parent=11 // pred_check
          %p201 = pneg %p115
        $region18: #{tpu_custom_call.1} parent=11 // pred_check_branch
          %203 = sbr.rel (%p201) target = $region20
        $region19: #{tpu_custom_call.1} parent=11 // pred_region
          _
        $region20: #{tpu_custom_call.1} parent=11 // pred_fallthru
          _
        // Predicated region
        $region21: #{tpu_custom_call.1} parent=11 // pred_check
          %p204 = pneg %p136
        $region22: #{tpu_custom_call.1} parent=11 // pred_check_branch
          %206 = sbr.rel (%p204) target = $region24
        $region23: #{tpu_custom_call.1} parent=11 // pred_region
          _
        $region24: #{tpu_custom_call.1} parent=11 // pred_fallthru
          _
        // Predicated region
        $region25: #{tpu_custom_call.1} parent=11 // pred_check
          %p207 = pneg %p157
        $region26: #{tpu_custom_call.1} parent=11 // pred_check_branch
          %209 = sbr.rel (%p207) target = $region28
        $region27: #{tpu_custom_call.1} parent=11 // pred_region
          _
        $region28: #{tpu_custom_call.1} parent=11 // pred_fallthru
          _
      $region12: #{tpu_custom_call.1} parent=5 // pred_fallthru
        _
      %p210 = scmp.lt.s32.totalorder %s21, 3
      // Predicated region
      $region29: #{tpu_custom_call.1} parent=5 // pred_check
        %p211 = pneg %p210
      $region30: #{tpu_custom_call.1} parent=5 // pred_check_branch
        %213 = sbr.rel (%p211) target = $region32
      $region31: #{tpu_custom_call.1} parent=5 // pred_region
        // Predicated region
        $region33: #{tpu_custom_call.1} parent=31 // pred_check
          %p214 = pneg %p41
        $region34: #{tpu_custom_call.1} parent=31 // pred_check_branch
          %216 = sbr.rel (%p214) target = $region36
        $region35: #{tpu_custom_call.1} parent=31 // pred_region
          %s217 = sand.u32 %s31, 1
          %s218 = scalar_lea.sflag [#allocation3], %s217
          %s219 = sand.u32 %s31, 1
          %s220 = scalar_lea.vmem [#allocation2], %s219
          %s222 = ssub.s32 16, 16
          %223 = vsyncadd %s218, %s222
          %s224 = smul.addr %s21, 16
          %s225 = scalar_lea.hbm %s0, %s224
          %s227 = sshll.u32 %s220, 4
          %s228 = int_to_ptr.vmem [resolvable:$true] %s227
          %230 = dma.hbm_to_vmem [thread:$0]  %s225, 16, %s228, %s218
        $region36: #{tpu_custom_call.1} parent=31 // pred_fallthru
          _
        // Predicated region
        $region37: #{tpu_custom_call.1} parent=31 // pred_check
          %p231 = pneg %p67
        $region38: #{tpu_custom_call.1} parent=31 // pred_check_branch
          %233 = sbr.rel (%p231) target = $region40
        $region39: #{tpu_custom_call.1} parent=31 // pred_region
          %s234 = sand.u32 %s57, 1
          %s235 = scalar_lea.sflag [#allocation6], %s234
          %s236 = sand.u32 %s57, 1
          %s237 = smul.addr %s236, 64
          %s238 = scalar_lea.vmem [#allocation5], %s237
          %s240 = ssub.s32 1024, 1024
          %241 = vsyncadd %s235, %s240
          %s242 = smul.addr %s21, 128
          %s243 = scalar_lea.hbm %s1, %s242
          %s244 = sshll.u32 %s238, 4
          %s245 = int_to_ptr.vmem [resolvable:$true] %s244
          %250 = dma.hbm_to_vmem [thread:$0]  %s243, 1024, %s245, %s235, 384, 128, 8
        $region40: #{tpu_custom_call.1} parent=31 // pred_fallthru
          _
      $region32: #{tpu_custom_call.1} parent=5 // pred_fallthru
        _
      %p251 = scmp.le.s32.totalorder 1, %s21
      %p252 = scmp.lt.s32.totalorder %s21, 4
      %p253 = pnand %p251, %p252
      %p254 = pneg %p253
      // Predicated region
      $region41: #{tpu_custom_call.1} parent=5 // pred_check
        _
      $region42: #{tpu_custom_call.1} parent=5 // pred_check_branch
        %256 = sbr.rel (%p253) target = $region44
      $region43: #{tpu_custom_call.1} parent=5 // pred_region
        %s257 = ssub.s32 %s21, 1
        %s258 = sand.u32 %s34, 1
        %s259 = scalar_lea.sflag [#allocation3], %s258
        %s260 = sand.u32 %s34, 1
        %s261 = scalar_lea.vmem [#allocation2], %s260
        // Predicated region
        $region45: #{tpu_custom_call.1} parent=43 // pred_check
          %p262 = pneg %p47
        $region46: #{tpu_custom_call.1} parent=43 // pred_check_branch
          %264 = sbr.rel (%p262) target = $region48
        $region47: #{tpu_custom_call.1} parent=43 // pred_region
          %265 = dma.done %s259, 16
        $region48: #{tpu_custom_call.1} parent=43 // pred_fallthru
          _
        %s266 = sand.u32 %s60, 1
        %s267 = scalar_lea.sflag [#allocation6], %s266
        %s268 = sand.u32 %s60, 1
        %s269 = smul.addr %s268, 64
        %s270 = scalar_lea.vmem [#allocation5], %s269
        // Predicated region
        $region49: #{tpu_custom_call.1} parent=43 // pred_check
          %p271 = pneg %p73
        $region50: #{tpu_custom_call.1} parent=43 // pred_check_branch
          %273 = sbr.rel (%p271) target = $region52
        $region51: #{tpu_custom_call.1} parent=43 // pred_region
          %274 = dma.done %s267, 1024
        $region52: #{tpu_custom_call.1} parent=43 // pred_fallthru
          _
        %s275 = sand.u32 %s34, 1
        %s276 = scalar_lea.sflag [#allocation3], %s275
        %s277 = sand.u32 %s34, 1
        %s278 = scalar_lea.vmem [#allocation2], %s277
        %p279 = pneg %p47
        %p280 = pneg %p44
        %s281 = sand.u32 %s60, 1
        %s282 = scalar_lea.sflag [#allocation6], %s281
        %s283 = sand.u32 %s60, 1
        %s284 = smul.addr %s283, 64
        %s285 = scalar_lea.vmem [#allocation5], %s284
        %p286 = pneg %p73
        %p287 = pneg %p70
        %p288 = pneg %p94
        %p289 = pneg %p91
        %p290 = pneg %p115
        %p291 = pneg %p112
        %p292 = pneg %p136
        %p293 = pneg %p133
        %p294 = pneg %p157
        %p295 = pneg %p154
        %p296 = pneg %p183
        %p297 = pneg %p180
        %s298 = sand.u32 %s170, 1
        %s299 = scalar_lea.sflag [#allocation4], %s298
        %s300 = sand.u32 %s170, 1
        %s301 = smul.addr %s300, 8
        %s302 = scalar_lea.vmem [#allocation7], %s301
        %v303 = vld [vmem:[%s261] sm:$0x1]
        %v304 = vsub.s32 %v303, 1
        %v305 = vld [vmem:[%s270] sm:$0xff]
        %v306 = vadd.f32 %v305, 0.0
        %vm307 = vcmp.eq.s32.totalorder %v304, 0
        %v308 = vsel %vm307, 1, 0
        %v309 = vlaneseq
        %v310 = vshrl.u32 %v309, 7
        %v311 = vsub.s32 0, %v310
        %v312 = vrot.slane %v308, %v311
        %vm313 = vcmp.eq.s32.totalorder %v312, 1
        %v314 = vsel %vm313, %v305, 0.0
        %s315 = scalar_lea.vmem %s270, 8 [#allocation5]
        %v316 = vld [vmem:[%s315] sm:$0xff]
        %v317 = vadd.f32 %v306, %v316
        %vm318 = vcmp.eq.s32.totalorder %v304, 1
        %v319 = vsel %vm318, 1, 0
        %v320 = vlaneseq
        %v321 = vshrl.u32 %v320, 7
        %v322 = vsub.s32 0, %v321
        %v323 = vrot.slane %v319, %v322
        %vm324 = vcmp.eq.s32.totalorder %v323, 1
        %v325 = vsel %vm324, %v316, %v314
        %s326 = scalar_lea.vmem %s270, 16 [#allocation5]
        %v327 = vld [vmem:[%s326] sm:$0xff]
        %v328 = vadd.f32 %v317, %v327
        %vm329 = vcmp.eq.s32.totalorder %v304, 2
        %v330 = vsel %vm329, 1, 0
        %v331 = vlaneseq
        %v332 = vshrl.u32 %v331, 7
        %v333 = vsub.s32 0, %v332
        %v334 = vrot.slane %v330, %v333
        %vm335 = vcmp.eq.s32.totalorder %v334, 1
        %v336 = vsel %vm335, %v327, %v325
        %s337 = scalar_lea.vmem %s270, 24 [#allocation5]
        %v338 = vld [vmem:[%s337] sm:$0xff]
        %v339 = vadd.f32 %v328, %v338
        %vm340 = vcmp.eq.s32.totalorder %v304, 3
        %v341 = vsel %vm340, 1, 0
        %v342 = vlaneseq
        %v343 = vshrl.u32 %v342, 7
        %v344 = vsub.s32 0, %v343
        %v345 = vrot.slane %v341, %v344
        %vm346 = vcmp.eq.s32.totalorder %v345, 1
        %v347 = vsel %vm346, %v338, %v336
        %s348 = scalar_lea.vmem %s270, 32 [#allocation5]
        %v349 = vld [vmem:[%s348] sm:$0xff]
        %v350 = vadd.f32 %v339, %v349
        %vm351 = vcmp.eq.s32.totalorder %v304, 4
        %v352 = vsel %vm351, 1, 0
        %v353 = vlaneseq
        %v354 = vshrl.u32 %v353, 7
        %v355 = vsub.s32 0, %v354
        %v356 = vrot.slane %v352, %v355
        %vm357 = vcmp.eq.s32.totalorder %v356, 1
        %v358 = vsel %vm357, %v349, %v347
        %s359 = scalar_lea.vmem %s270, 40 [#allocation5]
        %v360 = vld [vmem:[%s359] sm:$0xff]
        %v361 = vadd.f32 %v350, %v360
        %vm362 = vcmp.eq.s32.totalorder %v304, 5
        %v363 = vsel %vm362, 1, 0
        %v364 = vlaneseq
        %v365 = vshrl.u32 %v364, 7
        %v366 = vsub.s32 0, %v365
        %v367 = vrot.slane %v363, %v366
        %vm368 = vcmp.eq.s32.totalorder %v367, 1
        %v369 = vsel %vm368, %v360, %v358
        %s370 = scalar_lea.vmem %s270, 48 [#allocation5]
        %v371 = vld [vmem:[%s370] sm:$0xff]
        %v372 = vadd.f32 %v361, %v371
        %vm373 = vcmp.eq.s32.totalorder %v304, 6
        %v374 = vsel %vm373, 1, 0
        %v375 = vlaneseq
        %v376 = vshrl.u32 %v375, 7
        %v377 = vsub.s32 0, %v376
        %v378 = vrot.slane %v374, %v377
        %vm379 = vcmp.eq.s32.totalorder %v378, 1
        %v380 = vsel %vm379, %v371, %v369
        %s381 = scalar_lea.vmem %s270, 56 [#allocation5]
        %v382 = vld [vmem:[%s381] sm:$0xff]
        %v383 = vadd.f32 %v372, %v382
        %vm384 = vcmp.eq.s32.totalorder %v304, 7
        %v385 = vsel %vm384, 1, 0
        %v386 = vlaneseq
        %v387 = vshrl.u32 %v386, 7
        %v388 = vsub.s32 0, %v387
        %v389 = vrot.slane %v385, %v388
        %vm390 = vcmp.eq.s32.totalorder %v389, 1
        %v391 = vsel %vm390, %v382, %v380
        %v392 = vcvt.s32.f32 %v303
        %v394 = vlaneseq
        %v395 = vshrl.u32 %v394, 7
        %v396 = vsub.s32 0, %v395
        %v397 = vrot.slane %v392, %v396
        %v399 = vrcp.pop %v397
        %v400 = vmul.f32 %v383, %v399
        %v401 = vld [vmem:[%s2] sm:$0xff]
        %v402 = vld [vmem:[%s3] sm:$0xff]
        %404 = vset.pattern.permute.xlu0 0
        %405 = vperm.xlu0 %404, %v402
        %v406 = vpop.permute.xlu0 %405
        %vm408 = vcmask 64512
        %v410 = vsel %vm408, %v401, 0
        %412 = vmatprep.subr.mxu0 0.0
        %413 = vmatpush1.msra.mxu0 %v400
        %414 = vmatprep.subr.mxu0 0.0
        %415 = vmatpush1.msra.mxu0 0.0
        %416 = vmatprep.subr.mxu0 0.0
        %417 = vmatpush1.msra.mxu0 0.0
        %418 = vmatprep.subr.mxu0 0.0
        %419 = vmatpush1.msra.mxu0 0.0
        %420 = vmatprep.subr.mxu0 0.0
        %421 = vmatpush1.msra.mxu0 0.0
        %422 = vmatprep.subr.mxu0 0.0
        %423 = vmatpush1.msra.mxu0 0.0
        %424 = vmatprep.subr.mxu0 0.0
        %425 = vmatpush1.msra.mxu0 0.0
        %426 = vmatprep.subr.mxu0 0.0
        %427 = vmatpush1.msra.mxu0 0.0
        %428 = vmatprep.subr.mxu0 0.0
        %429 = vmatpush1.msra.mxu0 0.0
        %430 = vmatprep.subr.mxu0 0.0
        %431 = vmatpush1.msra.mxu0 0.0
        %432 = vmatprep.subr.mxu0 0.0
        %433 = vmatpush1.msra.mxu0 0.0
        %434 = vmatprep.subr.mxu0 0.0
        %435 = vmatpush1.msra.mxu0 0.0
        %436 = vmatprep.subr.mxu0 0.0
        %437 = vmatpush1.msra.mxu0 0.0
        %438 = vmatprep.subr.mxu0 0.0
        %439 = vmatpush1.msra.mxu0 0.0
        %440 = vmatprep.subr.mxu0 0.0
        %441 = vmatpush1.msra.mxu0 0.0
        %442 = vmatprep.subr.mxu0 0.0
        %443 = vmatpush1.msra.mxu0 0.0
        %444 = vmatprep.subr.mxu0 0.0
        %445 = vmatpush1.msra.mxu0 0.0
        %446 = vmatprep.subr.mxu0 0.0
        %447 = vmatpush1.msra.mxu0 0.0
        %448 = vmatprep.subr.mxu0 0.0
        %449 = vmatpush1.msra.mxu0 0.0
        %450 = vmatprep.subr.mxu0 0.0
        %451 = vmatpush1.msra.mxu0 0.0
        %452 = vmatprep.subr.mxu0 0.0
        %453 = vmatpush1.msra.mxu0 0.0
        %454 = vmatprep.subr.mxu0 0.0
        %455 = vmatpush1.msra.mxu0 0.0
        %456 = vmatprep.subr.mxu0 0.0
        %457 = vmatpush1.msra.mxu0 0.0
        %458 = vmatprep.subr.mxu0 0.0
        %459 = vmatpush1.msra.mxu0 0.0
        %460 = vmatprep.subr.mxu0 0.0
        %461 = vmatpush1.msra.mxu0 0.0
        %462 = vmatprep.subr.mxu0 0.0
        %463 = vmatpush1.msra.mxu0 0.0
        %464 = vmatprep.subr.mxu0 0.0
        %465 = vmatpush1.msra.mxu0 0.0
        %466 = vmatprep.subr.mxu0 0.0
        %467 = vmatpush1.msra.mxu0 0.0
        %468 = vmatprep.subr.mxu0 0.0
        %469 = vmatpush1.msra.mxu0 0.0
        %470 = vmatprep.subr.mxu0 0.0
        %471 = vmatpush1.msra.mxu0 0.0
        %472 = vmatprep.subr.mxu0 0.0
        %473 = vmatpush1.msra.mxu0 0.0
        %474 = vmatprep.subr.mxu0 0.0
        %475 = vmatpush1.msra.mxu0 0.0
        %476 = vmatprep.mubr.f32.mxu0 0.0
        %477 = vmatmul.mubr.f32.gmra.mrb[0].mxu0 %v410
        %v478 = vpop.f32.mrb[0].mxu0
        %v479 = vadd.f32 %v406, %v478
        %v480 = vpop.f32.mrb[0].mxu0
        %481 = vdwg.mxu0
        %v482 = vtanh.pop %v479
        %v483 = vld [vmem:[%s4] sm:$0xff]
        %v484 = vld [vmem:[%s5] sm:$0xff]
        %486 = vset.pattern.permute.xlu0 0
        %487 = vperm.xlu0 %486, %v484
        %v488 = vpop.permute.xlu0 %487
        %v491 = vsel %vm408, %v483, 0
        %493 = vmatprep.subr.mxu0 0.0
        %494 = vmatpush1.msra.mxu0 %v391
        %495 = vmatprep.subr.mxu0 0.0
        %496 = vmatpush1.msra.mxu0 0.0
        %497 = vmatprep.subr.mxu0 0.0
        %498 = vmatpush1.msra.mxu0 0.0
        %499 = vmatprep.subr.mxu0 0.0
        %500 = vmatpush1.msra.mxu0 0.0
        %501 = vmatprep.subr.mxu0 0.0
        %502 = vmatpush1.msra.mxu0 0.0
        %503 = vmatprep.subr.mxu0 0.0
        %504 = vmatpush1.msra.mxu0 0.0
        %505 = vmatprep.subr.mxu0 0.0
        %506 = vmatpush1.msra.mxu0 0.0
        %507 = vmatprep.subr.mxu0 0.0
        %508 = vmatpush1.msra.mxu0 0.0
        %509 = vmatprep.subr.mxu0 0.0
        %510 = vmatpush1.msra.mxu0 0.0
        %511 = vmatprep.subr.mxu0 0.0
        %512 = vmatpush1.msra.mxu0 0.0
        %513 = vmatprep.subr.mxu0 0.0
        %514 = vmatpush1.msra.mxu0 0.0
        %515 = vmatprep.subr.mxu0 0.0
        %516 = vmatpush1.msra.mxu0 0.0
        %517 = vmatprep.subr.mxu0 0.0
        %518 = vmatpush1.msra.mxu0 0.0
        %519 = vmatprep.subr.mxu0 0.0
        %520 = vmatpush1.msra.mxu0 0.0
        %521 = vmatprep.subr.mxu0 0.0
        %522 = vmatpush1.msra.mxu0 0.0
        %523 = vmatprep.subr.mxu0 0.0
        %524 = vmatpush1.msra.mxu0 0.0
        %525 = vmatprep.subr.mxu0 0.0
        %526 = vmatpush1.msra.mxu0 0.0
        %527 = vmatprep.subr.mxu0 0.0
        %528 = vmatpush1.msra.mxu0 0.0
        %529 = vmatprep.subr.mxu0 0.0
        %530 = vmatpush1.msra.mxu0 0.0
        %531 = vmatprep.subr.mxu0 0.0
        %532 = vmatpush1.msra.mxu0 0.0
        %533 = vmatprep.subr.mxu0 0.0
        %534 = vmatpush1.msra.mxu0 0.0
        %535 = vmatprep.subr.mxu0 0.0
        %536 = vmatpush1.msra.mxu0 0.0
        %537 = vmatprep.subr.mxu0 0.0
        %538 = vmatpush1.msra.mxu0 0.0
        %539 = vmatprep.subr.mxu0 0.0
        %540 = vmatpush1.msra.mxu0 0.0
        %541 = vmatprep.subr.mxu0 0.0
        %542 = vmatpush1.msra.mxu0 0.0
        %543 = vmatprep.subr.mxu0 0.0
        %544 = vmatpush1.msra.mxu0 0.0
        %545 = vmatprep.subr.mxu0 0.0
        %546 = vmatpush1.msra.mxu0 0.0
        %547 = vmatprep.subr.mxu0 0.0
        %548 = vmatpush1.msra.mxu0 0.0
        %549 = vmatprep.subr.mxu0 0.0
        %550 = vmatpush1.msra.mxu0 0.0
        %551 = vmatprep.subr.mxu0 0.0
        %552 = vmatpush1.msra.mxu0 0.0
        %553 = vmatprep.subr.mxu0 0.0
        %554 = vmatpush1.msra.mxu0 0.0
        %555 = vmatprep.subr.mxu0 0.0
        %556 = vmatpush1.msra.mxu0 0.0
        %557 = vmatprep.mubr.f32.mxu0 0.0
        %558 = vmatmul.mubr.f32.gmra.mrb[0].mxu0 %v491
        %v559 = vpop.f32.mrb[0].mxu0
        %v560 = vadd.f32 %v488, %v559
        %v561 = vpop.f32.mrb[0].mxu0
        %562 = vdwg.mxu0
        %v563 = vtanh.pop %v560
        %v564 = vmul.f32 %v482, %v563
        %565 = vst [vmem:[%s302] sm:$0xff] %v564
        %s566 = sand.u32 %s170, 1
        %s567 = scalar_lea.sflag [#allocation4], %s566
        %s568 = sand.u32 %s170, 1
        %s569 = smul.addr %s568, 8
        %s570 = scalar_lea.vmem [#allocation7], %s569
        // Predicated region
        $region53: #{tpu_custom_call.1} parent=43 // pred_check
          %p571 = pneg %p180
        $region54: #{tpu_custom_call.1} parent=43 // pred_check_branch
          %573 = sbr.rel (%p571) target = $region56
        $region55: #{tpu_custom_call.1} parent=43 // pred_region
          %s575 = ssub.s32 128, 128
          %576 = vsyncadd %s567, %s575
          %s577 = smul.addr %s26, 128
          %s578 = scalar_lea.hbm %s6, %s577
          %s580 = sshll.u32 %s570, 4
          %s581 = int_to_ptr.vmem [resolvable:$true] %s580
          %583 = dma.vmem_to_hbm [thread:$0]  %s581, 128, %s578, %s567
        $region56: #{tpu_custom_call.1} parent=43 // pred_fallthru
          _
      $region44: #{tpu_custom_call.1} parent=5 // pred_fallthru
        _
      %p584 = scmp.le.s32.totalorder 2, %s21
      // Predicated region
      $region57: #{tpu_custom_call.1} parent=5 // pred_check
        %p585 = pneg %p584
      $region58: #{tpu_custom_call.1} parent=5 // pred_check_branch
        %587 = sbr.rel (%p585) target = $region60
      $region59: #{tpu_custom_call.1} parent=5 // pred_region
        %s588 = ssub.s32 %s21, 2
        // Predicated region
        $region61: #{tpu_custom_call.1} parent=59 // pred_check
          %p589 = pneg %p186
        $region62: #{tpu_custom_call.1} parent=59 // pred_check_branch
          %591 = sbr.rel (%p589) target = $region64
        $region63: #{tpu_custom_call.1} parent=59 // pred_region
          %s592 = sand.u32 %s171, 1
          %s593 = scalar_lea.sflag [#allocation4], %s592
          %s594 = sand.u32 %s171, 1
          %s595 = smul.addr %s594, 8
          %s596 = scalar_lea.vmem [#allocation7], %s595
          %597 = dma.done %s593, 128
        $region64: #{tpu_custom_call.1} parent=59 // pred_fallthru
          _
      $region60: #{tpu_custom_call.1} parent=5 // pred_fallthru
        _
    $region6: #{tpu_custom_call.1} parent=1 // loop_footer
      %s25 = sadd.s32 1, %s21
    $region7: #{tpu_custom_call.1} parent=1 // loop_footer_branch
      %20 = sbr.rel target = $region3
    $region8: #{tpu_custom_call.1} parent=1 // loop_exit
      _
    %598 = vsyncpa [#allocation3], 1
    %s599 = scalar_lea.sflag [#allocation3], 1
    %600 = vsyncpa %s599, 1
    %601 = vsyncpa [#allocation6], 1
    %s602 = scalar_lea.sflag [#allocation6], 1
    %603 = vsyncpa %s602, 1
    %604 = vsyncpa [#allocation4], 1
    %s605 = scalar_lea.sflag [#allocation4], 1
    %606 = vsyncpa %s605, 1

</llo_original>
